<compile_context>
chip_gen: v7x
topology: tpu7x:2x2x1
jax: 0.10.0
libtpu: 0.0.40
codegen_flags: <defaults>
</compile_context>

<pallas_src>
import jax
import jax.numpy as jnp
from jax.experimental import pallas as pl
from jax.experimental.pallas import tpu as pltpu

d_model = 256
edge_num = 78
max_atoms = 13
k = 20
msp_len = 800
padding_idx = 799


def _round_up(a, m):
    return (a + m - 1) // m * m


def _pick_tb(B):
    """Pick batch elements per grid step (multiple of 8, <= 32).

    Trades the ~0.35 us per-step pipeline overhead (~ the HBM time of ~21 batch
    elements of embedded tokens) against wasted work on padded batch rows.
    """
    best = None
    for tb in (8, 16, 24, 32):
        b_pad = _round_up(B, tb)
        nb = b_pad // tb
        cost = 21 * nb + b_pad
        if best is None or cost < best[0] or (cost == best[0] and tb > best[1]):
            best = (cost, tb, b_pad, nb)
    return best[1], best[2], best[3]


def build_pair_indices():
    pi, pj = [], []
    for i in range(max_atoms):
        for j in range(i + 1, max_atoms):
            pi.append(i)
            pj.append(j)
    return jnp.asarray(pi, jnp.int32), jnp.asarray(pj, jnp.int32)


def classify20_kernel(x_ref, len_ref, w1_ref, b1_ref, w2k_ref, b2_ref,
                      pi_ref, pj_ref, out_ref):
    """One grid step processes TB batch elements.

    x_ref   : (k*TB, d_model)  embedded tokens, rows ordered (kk, b_local)
    len_ref : (TB, 1) int32    number of atoms per batch element
    w1_ref  : (d_model, edge_num), b1_ref: (1, edge_num)
    w2k_ref : (4*TB, k*TB)     kron(w2.T, I_TB) -- fuses ll2 with the permute
    b2_ref  : (4*TB, 1)        b2 repeated TB times (rows ordered (class, b_local))
    pi_ref, pj_ref : (1, edge_num) int32 atom-pair indices of each edge
    out_ref : (4, TB, edge_num) softmax probabilities, class-major (lane-dense)
    """
    TB = len_ref.shape[0]
    neg_inf = jnp.float32(-1.0e9)

    # ll1 on the flattened batch: (k*TB, d_model) @ (d_model, edge_num) + b1
    h = jnp.dot(x_ref[...], w1_ref[...],
                preferred_element_type=jnp.float32) + b1_ref[...]        # (k*TB, E)

    # ll2 + permute(0,2,1), transpose-free, as one MXU matmul with kron(w2.T, I_TB):
    #   y[c*TB + b, e] = sum_kk w2[kk, c] * h[kk*TB + b, e] + b2[c]
    y = jnp.dot(w2k_ref[...], h,
                preferred_element_type=jnp.float32) + b2_ref[...]        # (4*TB, E)

    # Per-batch edge padding mask (edge (i, j) padded if i >= len or j >= len).
    lengths = len_ref[...]                                               # (TB, 1)
    edge_masked = (pi_ref[...] >= lengths) | (pj_ref[...] >= lengths)    # (TB, E)

    # Split the 4 classes (static, tile-aligned slices; TB is a multiple of 8).
    # Class 0 is never masked; classes 1..3 get -1e9 on padded edges.
    rows = [y[c * TB:(c + 1) * TB, :] for c in range(4)]                 # each (TB, E)
    rows = [rows[0]] + [jnp.where(edge_masked, neg_inf, r) for r in rows[1:]]

    # Softmax over the 4 classes -> pure elementwise work on the 78-wide lanes.
    m = jnp.maximum(jnp.maximum(rows[0], rows[1]), jnp.maximum(rows[2], rows[3]))
    es = [jnp.exp(r - m) for r in rows]
    inv = pl.reciprocal(es[0] + es[1] + es[2] + es[3], approx=False)
    for c in range(4):
        out_ref[c, :, :] = (es[c] * inv).astype(out_ref.dtype)


@jax.jit
def classify20_forward(src, lengths, emb_table, w1, b1, w2, b2):
    B = src.shape[0]
    TB, B_pad, nb = _pick_tb(B)

    # Pad the batch to a multiple of TB (padded rows are sliced away at the end).
    src_p = jnp.pad(src, ((0, B_pad - B), (0, 0)), constant_values=padding_idx)
    len_p = jnp.pad(lengths.astype(jnp.int32), (0, B_pad - B), constant_values=0)

    # Embedding gather (XLA glue), laid out (block, kk, b_local) so the kernel's first
    # matmul is a single flattened (k*TB, d_model) @ (d_model, edge_num).
    # TODO(synk): fuse the embedding row gather into the kernel (manual DMA gather)
    #             to avoid the (B*k, d_model) f32 HBM round trip.
    src_ord = src_p.reshape(nb, TB, k).transpose(0, 2, 1).reshape(nb * k * TB)
    x_flat = jnp.take(emb_table, src_ord, axis=0)                        # (nb*k*TB, d_model)

    len_col = len_p.reshape(B_pad, 1)

    # Fuse ll2 with the permute: block-diagonal weight applied on the left of h.
    w2k = jnp.kron(w2.T, jnp.eye(TB, dtype=w2.dtype))                    # (4*TB, k*TB)
    b2_rep = jnp.repeat(b2, TB).reshape(4 * TB, 1)                       # row c*TB+b -> b2[c]
    b1_row = b1.reshape(1, edge_num)

    pi, pj = build_pair_indices()
    pi_row = pi.reshape(1, edge_num)
    pj_row = pj.reshape(1, edge_num)

    flops = (2 * B_pad * k * d_model * edge_num
             + 2 * nb * (4 * TB) * (k * TB) * edge_num)
    transcendentals = 4 * B_pad * edge_num
    bytes_accessed = 4 * (B_pad * k * d_model + 4 * B_pad * edge_num
                          + d_model * edge_num + (4 * TB) * (k * TB)
                          + 4 * TB + B_pad + 2 * edge_num)

    out = pl.pallas_call(
        classify20_kernel,
        out_shape=jax.ShapeDtypeStruct((4, B_pad, edge_num), jnp.float32),
        grid_spec=pltpu.PrefetchScalarGridSpec(
            num_scalar_prefetch=0,
            grid=(nb,),
            in_specs=[
                pl.BlockSpec((k * TB, d_model), lambda s: (s, 0)),    # x_flat
                pl.BlockSpec((TB, 1), lambda s: (s, 0)),              # lengths
                pl.BlockSpec((d_model, edge_num), lambda s: (0, 0)),  # w1
                pl.BlockSpec((1, edge_num), lambda s: (0, 0)),        # b1
                pl.BlockSpec((4 * TB, k * TB), lambda s: (0, 0)),     # kron(w2.T, I_TB)
                pl.BlockSpec((4 * TB, 1), lambda s: (0, 0)),          # b2 repeated
                pl.BlockSpec((1, edge_num), lambda s: (0, 0)),        # pi
                pl.BlockSpec((1, edge_num), lambda s: (0, 0)),        # pj
            ],
            out_specs=pl.BlockSpec((4, TB, edge_num), lambda s: (0, s, 0)),
        ),
        compiler_params=pltpu.CompilerParams(
            dimension_semantics=("parallel",),
        ),
        cost_estimate=pl.CostEstimate(
            flops=flops,
            transcendentals=transcendentals,
            bytes_accessed=bytes_accessed,
        ),
    )(x_flat, len_col, w1, b1_row, w2k, b2_rep, pi_row, pj_row)

    # Lane-dense kernel output (4, B_pad, E) -> module layout (B, edge_num, 4).
    return jnp.transpose(out[:, :B, :], (1, 2, 0))


def get_pad_mask0(lengths):
    """JAX equivalent of get_pad_mask0: (B, edge_num, 4) float mask (1.0 = fill)."""
    pi, pj = build_pair_indices()
    edge_masked = (pi[None, :] >= lengths[:, None]) | (pj[None, :] >= lengths[:, None])
    col_pattern = jnp.asarray([0.0, 1.0, 1.0, 1.0], jnp.float32)   # column 0 never masked
    return edge_masked[:, :, None].astype(jnp.float32) * col_pattern[None, None, :]


def init_params(key):
    k0, k1, k2, k3, k4 = jax.random.split(key, 5)
    emb_table = jax.random.normal(k0, (msp_len, d_model), jnp.float32)
    emb_table = emb_table.at[padding_idx].set(0.0)                 # padding_idx row zeroed
    # nn.Linear(d_model, edge_num): weight (edge_num, d_model) -> stored as (in, out)
    w1 = jax.random.normal(k1, (d_model, edge_num), jnp.float32) / jnp.sqrt(d_model)
    b1 = jax.random.normal(k2, (edge_num,), jnp.float32) * 0.01
    # nn.Linear(k, 4): weight (4, k) -> stored as (in, out)
    w2 = jax.random.normal(k3, (k, 4), jnp.float32) / jnp.sqrt(k)
    b2 = jax.random.normal(k4, (4,), jnp.float32) * 0.01
    return emb_table, w1, b1, w2, b2


def reference_forward(src, lengths, emb_table, w1, b1, w2, b2):
    """Pure-JAX reference matching the PyTorch module (HIGHEST-precision matmuls)."""
    emb = jnp.take(emb_table, src, axis=0)                                    # (B, k, d_model)
    h = jnp.einsum('bkd,de->bke', emb, w1, precision='highest') + b1          # (B, k, E)
    ht = jnp.transpose(h, (0, 2, 1))                                          # (B, E, k)
    y = jnp.einsum('bek,kc->bec', ht, w2, precision='highest') + b2           # (B, E, 4)
    mask = get_pad_mask0(lengths)
    y = jnp.where(mask > 0.0, -1.0e9, y)
    return jax.nn.softmax(y, axis=-1)


if __name__ == "__main__":
    key = jax.random.PRNGKey(0)
    pkey, skey, skey2, lkey2 = jax.random.split(key, 4)
    params = init_params(pkey)

    # Tolerance note: the XLA reference and the MXU kernel may use different f32
    # matmul pass counts on TPU (bf16-pass vs multi-pass); 2e-3 on post-softmax
    # probabilities still catches any structural bug (mask / permute / weights).
    ATOL = 2e-3
    RTOL = 2e-3

    # Small case (B=2): single grid step, padded batch.
    B = 2
    src = jax.random.randint(skey, (B, k), 0, msp_len, dtype=jnp.int32)   # (2, 20)
    lengths = jnp.asarray([5, 13], jnp.int32)          # per-batch vertex-list lengths
    out = jax.block_until_ready(classify20_forward(src, lengths, *params))
    ref = reference_forward(src, lengths, *params)
    assert out.shape == (B, edge_num, 4)
    assert jnp.allclose(out, ref, atol=ATOL, rtol=RTOL), "mismatch vs JAX reference (B=2)"

    # Larger case: exercises multiple grid steps and batch padding (TB=24, nb=2).
    B2 = 40
    src2 = jax.random.randint(skey2, (B2, k), 0, msp_len, dtype=jnp.int32)
    lengths2 = jax.random.randint(lkey2, (B2,), 1, max_atoms + 1, dtype=jnp.int32)
    out2 = jax.block_until_ready(classify20_forward(src2, lengths2, *params))
    ref2 = reference_forward(src2, lengths2, *params)
    assert out2.shape == (B2, edge_num, 4)
    assert jnp.allclose(out2, ref2, atol=ATOL, rtol=RTOL), "mismatch vs JAX reference (B=40)"

    print("KERNEL_OK")
</pallas_src>

<mosaic_0001>
module attributes {stable_mosaic.version = 11 : i64} {
  func.func @classify20_kernel(%arg0: i32, %arg1: memref<160x256xf32, #tpu.memory_space<vmem>>, %arg2: memref<8x1xi32, #tpu.memory_space<vmem>>, %arg3: memref<256x78xf32, #tpu.memory_space<vmem>>, %arg4: memref<1x78xf32, #tpu.memory_space<vmem>>, %arg5: memref<32x160xf32, #tpu.memory_space<vmem>>, %arg6: memref<32x1xf32, #tpu.memory_space<vmem>>, %arg7: memref<1x78xi32, #tpu.memory_space<vmem>>, %arg8: memref<1x78xi32, #tpu.memory_space<vmem>>, %arg9: memref<4x8x78xf32, #tpu.memory_space<vmem>>) attributes {dimension_semantics = [#tpu.dimension_semantics<parallel>], iteration_bounds = array<i64: 1>, scalar_prefetch = 0 : i64, scratch_operands = 0 : i64, tpu.core_type = #tpu.core_type<tc>, window_params = [{transform_indices = @transform_0, window_bounds = array<i64: 160, 256>}, {transform_indices = @transform_1, window_bounds = array<i64: 8, 1>}, {pipeline_mode = #tpu.pipeline_mode<synchronous>, transform_indices = @transform_2, window_bounds = array<i64: 256, 78>}, {pipeline_mode = #tpu.pipeline_mode<synchronous>, transform_indices = @transform_3, window_bounds = array<i64: 1, 78>}, {pipeline_mode = #tpu.pipeline_mode<synchronous>, transform_indices = @transform_4, window_bounds = array<i64: 32, 160>}, {pipeline_mode = #tpu.pipeline_mode<synchronous>, transform_indices = @transform_5, window_bounds = array<i64: 32, 1>}, {pipeline_mode = #tpu.pipeline_mode<synchronous>, transform_indices = @transform_6, window_bounds = array<i64: 1, 78>}, {pipeline_mode = #tpu.pipeline_mode<synchronous>, transform_indices = @transform_7, window_bounds = array<i64: 1, 78>}, {transform_indices = @transform_8, window_bounds = array<i64: 4, 8, 78>}]} {
    %c0 = arith.constant 0 : index
    %c0_0 = arith.constant 0 : index
    %0 = vector.load %arg1[%c0, %c0_0] : memref<160x256xf32, #tpu.memory_space<vmem>>, vector<160x256xf32>
    %c0_1 = arith.constant 0 : index
    %c0_2 = arith.constant 0 : index
    %1 = vector.load %arg3[%c0_1, %c0_2] : memref<256x78xf32, #tpu.memory_space<vmem>>, vector<256x78xf32>
    %cst = arith.constant dense<0.000000e+00> : vector<160x78xf32>
    %2 = tpu.matmul %0, %1, %cst {dimension_numbers = #tpu.dot_dimension_numbers<[1], [0], [0], [1], [0, 0, 1, 1], [], []>} : vector<160x256xf32>, vector<256x78xf32>, vector<160x78xf32> -> vector<160x78xf32>
    %c0_3 = arith.constant 0 : index
    %c0_4 = arith.constant 0 : index
    %3 = vector.load %arg4[%c0_3, %c0_4] : memref<1x78xf32, #tpu.memory_space<vmem>>, vector<1x78xf32>
    %4 = vector.broadcast %3 : vector<1x78xf32> to vector<160x78xf32>
    %5 = arith.addf %2, %4 : vector<160x78xf32>
    %c0_5 = arith.constant 0 : index
    %c0_6 = arith.constant 0 : index
    %6 = vector.load %arg5[%c0_5, %c0_6] : memref<32x160xf32, #tpu.memory_space<vmem>>, vector<32x160xf32>
    %cst_7 = arith.constant dense<0.000000e+00> : vector<32x78xf32>
    %7 = tpu.matmul %6, %5, %cst_7 {dimension_numbers = #tpu.dot_dimension_numbers<[1], [0], [0], [1], [0, 0, 1, 1], [], []>} : vector<32x160xf32>, vector<160x78xf32>, vector<32x78xf32> -> vector<32x78xf32>
    %c0_8 = arith.constant 0 : index
    %c0_9 = arith.constant 0 : index
    %8 = vector.load %arg6[%c0_8, %c0_9] : memref<32x1xf32, #tpu.memory_space<vmem>>, vector<32x1xf32>
    %9 = vector.broadcast %8 : vector<32x1xf32> to vector<32x78xf32>
    %10 = arith.addf %7, %9 : vector<32x78xf32>
    %c0_10 = arith.constant 0 : index
    %c0_11 = arith.constant 0 : index
    %11 = vector.load %arg2[%c0_10, %c0_11] : memref<8x1xi32, #tpu.memory_space<vmem>>, vector<8x1xi32>
    %c0_12 = arith.constant 0 : index
    %c0_13 = arith.constant 0 : index
    %12 = vector.load %arg7[%c0_12, %c0_13] : memref<1x78xi32, #tpu.memory_space<vmem>>, vector<1x78xi32>
    %13 = vector.broadcast %12 : vector<1x78xi32> to vector<8x78xi32>
    %14 = vector.broadcast %11 : vector<8x1xi32> to vector<8x78xi32>
    %15 = arith.cmpi sge, %13, %14 : vector<8x78xi32>
    %c0_14 = arith.constant 0 : index
    %c0_15 = arith.constant 0 : index
    %16 = vector.load %arg8[%c0_14, %c0_15] : memref<1x78xi32, #tpu.memory_space<vmem>>, vector<1x78xi32>
    %17 = vector.broadcast %16 : vector<1x78xi32> to vector<8x78xi32>
    %18 = vector.broadcast %11 : vector<8x1xi32> to vector<8x78xi32>
    %19 = arith.cmpi sge, %17, %18 : vector<8x78xi32>
    %20 = arith.ori %15, %19 : vector<8x78xi1>
    %21 = vector.extract_strided_slice %10 {offsets = [0, 0], sizes = [8, 78], strides = [1, 1]} : vector<32x78xf32> to vector<8x78xf32>
    %22 = vector.extract_strided_slice %10 {offsets = [8, 0], sizes = [8, 78], strides = [1, 1]} : vector<32x78xf32> to vector<8x78xf32>
    %23 = vector.extract_strided_slice %10 {offsets = [16, 0], sizes = [8, 78], strides = [1, 1]} : vector<32x78xf32> to vector<8x78xf32>
    %24 = vector.extract_strided_slice %10 {offsets = [24, 0], sizes = [8, 78], strides = [1, 1]} : vector<32x78xf32> to vector<8x78xf32>
    %cst_16 = arith.constant -1.000000e+09 : f32
    %25 = vector.broadcast %cst_16 : f32 to vector<8x78xf32>
    %26 = arith.select %20, %25, %22 : vector<8x78xi1>, vector<8x78xf32>
    %cst_17 = arith.constant -1.000000e+09 : f32
    %27 = vector.broadcast %cst_17 : f32 to vector<8x78xf32>
    %28 = arith.select %20, %27, %23 : vector<8x78xi1>, vector<8x78xf32>
    %cst_18 = arith.constant -1.000000e+09 : f32
    %29 = vector.broadcast %cst_18 : f32 to vector<8x78xf32>
    %30 = arith.select %20, %29, %24 : vector<8x78xi1>, vector<8x78xf32>
    %31 = arith.maximumf %21, %26 : vector<8x78xf32>
    %32 = arith.maximumf %28, %30 : vector<8x78xf32>
    %33 = arith.maximumf %31, %32 : vector<8x78xf32>
    %34 = arith.subf %21, %33 : vector<8x78xf32>
    %35 = math.exp %34 : vector<8x78xf32>
    %36 = arith.subf %26, %33 : vector<8x78xf32>
    %37 = math.exp %36 : vector<8x78xf32>
    %38 = arith.subf %28, %33 : vector<8x78xf32>
    %39 = math.exp %38 : vector<8x78xf32>
    %40 = arith.subf %30, %33 : vector<8x78xf32>
    %41 = math.exp %40 : vector<8x78xf32>
    %42 = arith.addf %35, %37 : vector<8x78xf32>
    %43 = arith.addf %42, %39 : vector<8x78xf32>
    %44 = arith.addf %43, %41 : vector<8x78xf32>
    %45 = tpu.reciprocal %44 : vector<8x78xf32> -> vector<8x78xf32>
    %46 = arith.mulf %35, %45 : vector<8x78xf32>
    %c0_19 = arith.constant 0 : index
    %c0_20 = arith.constant 0 : index
    %c0_21 = arith.constant 0 : index
    %47 = vector.load %arg9[%c0_19, %c0_20, %c0_21] : memref<4x8x78xf32, #tpu.memory_space<vmem>>, vector<1x8x78xf32>
    %48 = vector.shape_cast %47 : vector<1x8x78xf32> to vector<8x78xf32>
    %49 = vector.shape_cast %46 : vector<8x78xf32> to vector<1x8x78xf32>
    tpu.vector_store %arg9[%c0_19, %c0_20, %c0_21], %49 {strides = array<i32>} : memref<4x8x78xf32, #tpu.memory_space<vmem>>, vector<1x8x78xf32>,
    %50 = arith.mulf %37, %45 : vector<8x78xf32>
    %c1 = arith.constant 1 : index
    %c0_22 = arith.constant 0 : index
    %c0_23 = arith.constant 0 : index
    %51 = vector.load %arg9[%c1, %c0_22, %c0_23] : memref<4x8x78xf32, #tpu.memory_space<vmem>>, vector<1x8x78xf32>
    %52 = vector.shape_cast %51 : vector<1x8x78xf32> to vector<8x78xf32>
    %53 = vector.shape_cast %50 : vector<8x78xf32> to vector<1x8x78xf32>
    tpu.vector_store %arg9[%c1, %c0_22, %c0_23], %53 {strides = array<i32>} : memref<4x8x78xf32, #tpu.memory_space<vmem>>, vector<1x8x78xf32>,
    %54 = arith.mulf %39, %45 : vector<8x78xf32>
    %c2 = arith.constant 2 : index
    %c0_24 = arith.constant 0 : index
    %c0_25 = arith.constant 0 : index
    %55 = vector.load %arg9[%c2, %c0_24, %c0_25] : memref<4x8x78xf32, #tpu.memory_space<vmem>>, vector<1x8x78xf32>
    %56 = vector.shape_cast %55 : vector<1x8x78xf32> to vector<8x78xf32>
    %57 = vector.shape_cast %54 : vector<8x78xf32> to vector<1x8x78xf32>
    tpu.vector_store %arg9[%c2, %c0_24, %c0_25], %57 {strides = array<i32>} : memref<4x8x78xf32, #tpu.memory_space<vmem>>, vector<1x8x78xf32>,
    %58 = arith.mulf %41, %45 : vector<8x78xf32>
    %c3 = arith.constant 3 : index
    %c0_26 = arith.constant 0 : index
    %c0_27 = arith.constant 0 : index
    %59 = vector.load %arg9[%c3, %c0_26, %c0_27] : memref<4x8x78xf32, #tpu.memory_space<vmem>>, vector<1x8x78xf32>
    %60 = vector.shape_cast %59 : vector<1x8x78xf32> to vector<8x78xf32>
    %61 = vector.shape_cast %58 : vector<8x78xf32> to vector<1x8x78xf32>
    tpu.vector_store %arg9[%c3, %c0_26, %c0_27], %61 {strides = array<i32>} : memref<4x8x78xf32, #tpu.memory_space<vmem>>, vector<1x8x78xf32>,
    return
  }
  func.func @transform_0(%arg0: i32) -> (i32, i32) {
    %c0_i32 = arith.constant 0 : i32
    %c0_i32_0 = arith.constant 0 : i32
    return %arg0, %c0_i32 : i32, i32
  }
  func.func @transform_1(%arg0: i32) -> (i32, i32) {
    %c0_i32 = arith.constant 0 : i32
    %c0_i32_0 = arith.constant 0 : i32
    return %arg0, %c0_i32 : i32, i32
  }
  func.func @transform_2(%arg0: i32) -> (i32, i32) {
    %c0_i32 = arith.constant 0 : i32
    %c0_i32_0 = arith.constant 0 : i32
    %c0_i32_1 = arith.constant 0 : i32
    return %c0_i32, %c0_i32_0 : i32, i32
  }
  func.func @transform_3(%arg0: i32) -> (i32, i32) {
    %c0_i32 = arith.constant 0 : i32
    %c0_i32_0 = arith.constant 0 : i32
    %c0_i32_1 = arith.constant 0 : i32
    return %c0_i32, %c0_i32_0 : i32, i32
  }
  func.func @transform_4(%arg0: i32) -> (i32, i32) {
    %c0_i32 = arith.constant 0 : i32
    %c0_i32_0 = arith.constant 0 : i32
    %c0_i32_1 = arith.constant 0 : i32
    return %c0_i32, %c0_i32_0 : i32, i32
  }
  func.func @transform_5(%arg0: i32) -> (i32, i32) {
    %c0_i32 = arith.constant 0 : i32
    %c0_i32_0 = arith.constant 0 : i32
    %c0_i32_1 = arith.constant 0 : i32
    return %c0_i32, %c0_i32_0 : i32, i32
  }
  func.func @transform_6(%arg0: i32) -> (i32, i32) {
    %c0_i32 = arith.constant 0 : i32
    %c0_i32_0 = arith.constant 0 : i32
    %c0_i32_1 = arith.constant 0 : i32
    return %c0_i32, %c0_i32_0 : i32, i32
  }
  func.func @transform_7(%arg0: i32) -> (i32, i32) {
    %c0_i32 = arith.constant 0 : i32
    %c0_i32_0 = arith.constant 0 : i32
    %c0_i32_1 = arith.constant 0 : i32
    return %c0_i32, %c0_i32_0 : i32, i32
  }
  func.func @transform_8(%arg0: i32) -> (i32, i32, i32) {
    %c0_i32 = arith.constant 0 : i32
    %c0_i32_0 = arith.constant 0 : i32
    %c0_i32_1 = arith.constant 0 : i32
    return %c0_i32, %arg0, %c0_i32_0 : i32, i32, i32
  }
}

</mosaic_0001>

<llo_original>
// kernel: classify20_forward.1
$region0: #{classify20_forward.1}
  #allocation0 [shape = 'u32[]', space=smem, size = 0x4, offset = 0x4, fixed_abs, tag = 'smem constant byte address 0x4 - core index']
  #allocation1 [shape = 'u32[144,128]{1,0:T(1,128)}', space=vmem, size = 0x12000, scoped, tag = 'internal scratch']
  %s0 = inlined_call_operand.vmem [shape: f32[160,256], index: 0, kind: input, shape index: {}]
  %s1 = inlined_call_operand.vmem [shape: s32[8,1], index: 1, kind: input, shape index: {}]
  %s2 = inlined_call_operand.vmem [shape: f32[256,78], index: 2, kind: input, shape index: {}]
  %s3 = inlined_call_operand.vmem [shape: f32[1,78], index: 3, kind: input, shape index: {}]
  %s4 = inlined_call_operand.vmem [shape: f32[32,160], index: 4, kind: input, shape index: {}]
  %s5 = inlined_call_operand.vmem [shape: f32[32,1], index: 5, kind: input, shape index: {}]
  %s6 = inlined_call_operand.vmem [shape: s32[1,78], index: 6, kind: input, shape index: {}]
  %s7 = inlined_call_operand.vmem [shape: s32[1,78], index: 7, kind: input, shape index: {}]
  %s8 = inlined_call_operand.vmem [shape: f32[4,8,78], index: 8, kind: output, shape index: {}]
  %s9 = sld [smem:[#allocation0]]
  $region42: #{classify20_forward.1} parent=0
    _
  %s11 = ssub.s32 1, %s9
  %s12 = scalar_select 0, %s11, %s9
  // Predicated region
  $region2: #{classify20_forward.1} parent=0 // pred_check
    _
  $region3: #{classify20_forward.1} parent=0 // pred_check_branch
    %14 = sbr.rel (0) target = $region5
  $region4: #{classify20_forward.1} parent=0 // pred_region
    _
  $region5: #{classify20_forward.1} parent=0 // pred_fallthru
    _
  // Predicated region
  $region6: #{classify20_forward.1} parent=0 // pred_check
    _
  $region7: #{classify20_forward.1} parent=0 // pred_check_branch
    %16 = sbr.rel (0) target = $region9
  $region8: #{classify20_forward.1} parent=0 // pred_region
    _
  $region9: #{classify20_forward.1} parent=0 // pred_fallthru
    _
  // Predicated region
  $region10: #{classify20_forward.1} parent=0 // pred_check
    _
  $region11: #{classify20_forward.1} parent=0 // pred_check_branch
    %18 = sbr.rel (0) target = $region13
  $region12: #{classify20_forward.1} parent=0 // pred_region
    _
  $region13: #{classify20_forward.1} parent=0 // pred_fallthru
    _
  // Predicated region
  $region14: #{classify20_forward.1} parent=0 // pred_check
    _
  $region15: #{classify20_forward.1} parent=0 // pred_check_branch
    %20 = sbr.rel (0) target = $region17
  $region16: #{classify20_forward.1} parent=0 // pred_region
    _
  $region17: #{classify20_forward.1} parent=0 // pred_fallthru
    _
  // Predicated region
  $region18: #{classify20_forward.1} parent=0 // pred_check
    _
  $region19: #{classify20_forward.1} parent=0 // pred_check_branch
    %22 = sbr.rel (0) target = $region21
  $region20: #{classify20_forward.1} parent=0 // pred_region
    _
  $region21: #{classify20_forward.1} parent=0 // pred_fallthru
    _
  // Predicated region
  $region22: #{classify20_forward.1} parent=0 // pred_check
    _
  $region23: #{classify20_forward.1} parent=0 // pred_check_branch
    %24 = sbr.rel (0) target = $region25
  $region24: #{classify20_forward.1} parent=0 // pred_region
    _
  $region25: #{classify20_forward.1} parent=0 // pred_fallthru
    _
  // Predicated region
  $region26: #{classify20_forward.1} parent=0 // pred_check
    _
  $region27: #{classify20_forward.1} parent=0 // pred_check_branch
    %26 = sbr.rel (0) target = $region29
  $region28: #{classify20_forward.1} parent=0 // pred_region
    _
  $region29: #{classify20_forward.1} parent=0 // pred_fallthru
    _
  // Predicated region
  $region30: #{classify20_forward.1} parent=0 // pred_check
    _
  $region31: #{classify20_forward.1} parent=0 // pred_check_branch
    %28 = sbr.rel (0) target = $region33
  $region32: #{classify20_forward.1} parent=0 // pred_region
    _
  $region33: #{classify20_forward.1} parent=0 // pred_fallthru
    _
  %v29 = vld [vmem:[%s0] sm:$0xff]
  %v30 = vld [vmem:[%s0 + $0x8] sm:$0xff]
  %v31 = vld [vmem:[%s0 + $0x10] sm:$0xff]
  %v32 = vld [vmem:[%s0 + $0x18] sm:$0xff]
  %v33 = vld [vmem:[%s0 + $0x20] sm:$0xff]
  %v34 = vld [vmem:[%s0 + $0x28] sm:$0xff]
  %v35 = vld [vmem:[%s0 + $0x30] sm:$0xff]
  %v36 = vld [vmem:[%s0 + $0x38] sm:$0xff]
  %v37 = vld [vmem:[%s0 + $0x40] sm:$0xff]
  %v38 = vld [vmem:[%s0 + $0x48] sm:$0xff]
  %v39 = vld [vmem:[%s0 + $0x50] sm:$0xff]
  %v40 = vld [vmem:[%s0 + $0x58] sm:$0xff]
  %v41 = vld [vmem:[%s0 + $0x60] sm:$0xff]
  %v42 = vld [vmem:[%s0 + $0x68] sm:$0xff]
  %v43 = vld [vmem:[%s0 + $0x70] sm:$0xff]
  %v44 = vld [vmem:[%s0 + $0x78] sm:$0xff]
  %v45 = vld [vmem:[%s0 + $0x80] sm:$0xff]
  %v46 = vld [vmem:[%s0 + $0x88] sm:$0xff]
  %v47 = vld [vmem:[%s0 + $0x90] sm:$0xff]
  %v48 = vld [vmem:[%s0 + $0x98] sm:$0xff]
  %v49 = vld [vmem:[%s0 + $0xa0] sm:$0xff]
  %v50 = vld [vmem:[%s0 + $0xa8] sm:$0xff]
  %v51 = vld [vmem:[%s0 + $0xb0] sm:$0xff]
  %v52 = vld [vmem:[%s0 + $0xb8] sm:$0xff]
  %v53 = vld [vmem:[%s0 + $0xc0] sm:$0xff]
  %v54 = vld [vmem:[%s0 + $0xc8] sm:$0xff]
  %v55 = vld [vmem:[%s0 + $0xd0] sm:$0xff]
  %v56 = vld [vmem:[%s0 + $0xd8] sm:$0xff]
  %v57 = vld [vmem:[%s0 + $0xe0] sm:$0xff]
  %v58 = vld [vmem:[%s0 + $0xe8] sm:$0xff]
  %v59 = vld [vmem:[%s0 + $0xf0] sm:$0xff]
  %v60 = vld [vmem:[%s0 + $0xf8] sm:$0xff]
  %v61 = vld [vmem:[%s0 + $0x100] sm:$0xff]
  %v62 = vld [vmem:[%s0 + $0x108] sm:$0xff]
  %v63 = vld [vmem:[%s0 + $0x110] sm:$0xff]
  %v64 = vld [vmem:[%s0 + $0x118] sm:$0xff]
  %v65 = vld [vmem:[%s0 + $0x120] sm:$0xff]
  %v66 = vld [vmem:[%s0 + $0x128] sm:$0xff]
  %v67 = vld [vmem:[%s0 + $0x130] sm:$0xff]
  %v68 = vld [vmem:[%s0 + $0x138] sm:$0xff]
  %v69 = vld [vmem:[%s2] sm:$0xff]
  %v70 = vld [vmem:[%s2 + $0x8] sm:$0xff]
  %v71 = vld [vmem:[%s2 + $0x10] sm:$0xff]
  %v72 = vld [vmem:[%s2 + $0x18] sm:$0xff]
  %v73 = vld [vmem:[%s2 + $0x20] sm:$0xff]
  %v74 = vld [vmem:[%s2 + $0x28] sm:$0xff]
  %v75 = vld [vmem:[%s2 + $0x30] sm:$0xff]
  %v76 = vld [vmem:[%s2 + $0x38] sm:$0xff]
  %v77 = vld [vmem:[%s2 + $0x40] sm:$0xff]
  %v78 = vld [vmem:[%s2 + $0x48] sm:$0xff]
  %v79 = vld [vmem:[%s2 + $0x50] sm:$0xff]
  %v80 = vld [vmem:[%s2 + $0x58] sm:$0xff]
  %v81 = vld [vmem:[%s2 + $0x60] sm:$0xff]
  %v82 = vld [vmem:[%s2 + $0x68] sm:$0xff]
  %v83 = vld [vmem:[%s2 + $0x70] sm:$0xff]
  %v84 = vld [vmem:[%s2 + $0x78] sm:$0xff]
  %v85 = vld [vmem:[%s2 + $0x80] sm:$0xff]
  %v86 = vld [vmem:[%s2 + $0x88] sm:$0xff]
  %v87 = vld [vmem:[%s2 + $0x90] sm:$0xff]
  %v88 = vld [vmem:[%s2 + $0x98] sm:$0xff]
  %v89 = vld [vmem:[%s2 + $0xa0] sm:$0xff]
  %v90 = vld [vmem:[%s2 + $0xa8] sm:$0xff]
  %v91 = vld [vmem:[%s2 + $0xb0] sm:$0xff]
  %v92 = vld [vmem:[%s2 + $0xb8] sm:$0xff]
  %v93 = vld [vmem:[%s2 + $0xc0] sm:$0xff]
  %v94 = vld [vmem:[%s2 + $0xc8] sm:$0xff]
  %v95 = vld [vmem:[%s2 + $0xd0] sm:$0xff]
  %v96 = vld [vmem:[%s2 + $0xd8] sm:$0xff]
  %v97 = vld [vmem:[%s2 + $0xe0] sm:$0xff]
  %v98 = vld [vmem:[%s2 + $0xe8] sm:$0xff]
  %v99 = vld [vmem:[%s2 + $0xf0] sm:$0xff]
  %v100 = vld [vmem:[%s2 + $0xf8] sm:$0xff]
  %v101 = vld [vmem:[%s3] sm:$0x1]
  %v103 = vlaneseq
  %v104 = vshrl.u32 %v103, 7
  %v105 = vsub.s32 0, %v104
  %v106 = vrot.slane %v101, %v105
  %108 = vmatprep.subr.mxu0 0.0
  %109 = vmatpush1.msra.mxu0 %v69
  %110 = vmatprep.subr.mxu0 0.0
  %111 = vmatpush1.msra.mxu0 %v70
  %112 = vmatprep.subr.mxu0 0.0
  %113 = vmatpush1.msra.mxu0 %v71
  %114 = vmatprep.subr.mxu0 0.0
  %115 = vmatpush1.msra.mxu0 %v72
  %116 = vmatprep.subr.mxu0 0.0
  %117 = vmatpush1.msra.mxu0 %v73
  %118 = vmatprep.subr.mxu0 0.0
  %119 = vmatpush1.msra.mxu0 %v74
  %120 = vmatprep.subr.mxu0 0.0
  %121 = vmatpush1.msra.mxu0 %v75
  %122 = vmatprep.subr.mxu0 0.0
  %123 = vmatpush1.msra.mxu0 %v76
  %124 = vmatprep.subr.mxu0 0.0
  %125 = vmatpush1.msra.mxu0 %v77
  %126 = vmatprep.subr.mxu0 0.0
  %127 = vmatpush1.msra.mxu0 %v78
  %128 = vmatprep.subr.mxu0 0.0
  %129 = vmatpush1.msra.mxu0 %v79
  %130 = vmatprep.subr.mxu0 0.0
  %131 = vmatpush1.msra.mxu0 %v80
  %132 = vmatprep.subr.mxu0 0.0
  %133 = vmatpush1.msra.mxu0 %v81
  %134 = vmatprep.subr.mxu0 0.0
  %135 = vmatpush1.msra.mxu0 %v82
  %136 = vmatprep.subr.mxu0 0.0
  %137 = vmatpush1.msra.mxu0 %v83
  %138 = vmatprep.subr.mxu0 0.0
  %139 = vmatpush1.msra.mxu0 %v84
  %140 = vmatprep.subr.mxu0 0.0
  %141 = vmatpush1.msra.mxu0 %v85
  %142 = vmatprep.subr.mxu0 0.0
  %143 = vmatpush1.msra.mxu0 %v86
  %144 = vmatprep.subr.mxu0 0.0
  %145 = vmatpush1.msra.mxu0 %v87
  %146 = vmatprep.subr.mxu0 0.0
  %147 = vmatpush1.msra.mxu0 %v88
  %148 = vmatprep.subr.mxu0 0.0
  %149 = vmatpush1.msra.mxu0 %v89
  %150 = vmatprep.subr.mxu0 0.0
  %151 = vmatpush1.msra.mxu0 %v90
  %152 = vmatprep.subr.mxu0 0.0
  %153 = vmatpush1.msra.mxu0 %v91
  %154 = vmatprep.subr.mxu0 0.0
  %155 = vmatpush1.msra.mxu0 %v92
  %156 = vmatprep.subr.mxu0 0.0
  %157 = vmatpush1.msra.mxu0 %v93
  %158 = vmatprep.subr.mxu0 0.0
  %159 = vmatpush1.msra.mxu0 %v94
  %160 = vmatprep.subr.mxu0 0.0
  %161 = vmatpush1.msra.mxu0 %v95
  %162 = vmatprep.subr.mxu0 0.0
  %163 = vmatpush1.msra.mxu0 %v96
  %164 = vmatprep.subr.mxu0 0.0
  %165 = vmatpush1.msra.mxu0 %v97
  %166 = vmatprep.subr.mxu0 0.0
  %167 = vmatpush1.msra.mxu0 %v98
  %168 = vmatprep.subr.mxu0 0.0
  %169 = vmatpush1.msra.mxu0 %v99
  %170 = vmatprep.subr.mxu0 0.0
  %171 = vmatpush1.msra.mxu0 %v100
  %172 = vmatprep.mubr.f32.mxu0 %v30
  %173 = vmatmul.mubr.f32.gmra.mrb[0].mxu0 %v29
  %v174 = vpop.f32.mrb[0].mxu0
  %v175 = vadd.f32 %v106, %v174
  %v176 = vpop.f32.mrb[0].mxu0
  %177 = vmatprep.mubr.f32.mxu0 %v32
  %178 = vmatmul.mubr.f32.gmra.mrb[0].mxu0 %v31
  %v179 = vpop.f32.mrb[0].mxu0
  %v180 = vadd.f32 %v106, %v179
  %v181 = vpop.f32.mrb[0].mxu0
  %182 = vmatprep.mubr.f32.mxu0 %v34
  %183 = vmatmul.mubr.f32.gmra.mrb[0].mxu0 %v33
  %v184 = vpop.f32.mrb[0].mxu0
  %v185 = vadd.f32 %v106, %v184
  %v186 = vpop.f32.mrb[0].mxu0
  %187 = vmatprep.mubr.f32.mxu0 %v36
  %188 = vmatmul.mubr.f32.gmra.mrb[0].mxu0 %v35
  %v189 = vpop.f32.mrb[0].mxu0
  %v190 = vadd.f32 %v106, %v189
  %v191 = vpop.f32.mrb[0].mxu0
  %192 = vmatprep.mubr.f32.mxu0 %v38
  %193 = vmatmul.mubr.f32.gmra.mrb[0].mxu0 %v37
  %v194 = vpop.f32.mrb[0].mxu0
  %v195 = vadd.f32 %v106, %v194
  %v196 = vpop.f32.mrb[0].mxu0
  %197 = vmatprep.mubr.f32.mxu0 %v40
  %198 = vmatmul.mubr.f32.gmra.mrb[0].mxu0 %v39
  %v199 = vpop.f32.mrb[0].mxu0
  %v200 = vadd.f32 %v106, %v199
  %v201 = vpop.f32.mrb[0].mxu0
  %202 = vmatprep.mubr.f32.mxu0 %v42
  %203 = vmatmul.mubr.f32.gmra.mrb[0].mxu0 %v41
  %v204 = vpop.f32.mrb[0].mxu0
  %v205 = vadd.f32 %v106, %v204
  %v206 = vpop.f32.mrb[0].mxu0
  %207 = vmatprep.mubr.f32.mxu0 %v44
  %208 = vmatmul.mubr.f32.gmra.mrb[0].mxu0 %v43
  %v209 = vpop.f32.mrb[0].mxu0
  %v210 = vadd.f32 %v106, %v209
  %v211 = vpop.f32.mrb[0].mxu0
  %212 = vmatprep.mubr.f32.mxu0 %v46
  %213 = vmatmul.mubr.f32.gmra.mrb[0].mxu0 %v45
  %v214 = vpop.f32.mrb[0].mxu0
  %v215 = vadd.f32 %v106, %v214
  %v216 = vpop.f32.mrb[0].mxu0
  %217 = vmatprep.mubr.f32.mxu0 %v48
  %218 = vmatmul.mubr.f32.gmra.mrb[0].mxu0 %v47
  %v219 = vpop.f32.mrb[0].mxu0
  %v220 = vadd.f32 %v106, %v219
  %v221 = vpop.f32.mrb[0].mxu0
  %222 = vmatprep.mubr.f32.mxu0 %v50
  %223 = vmatmul.mubr.f32.gmra.mrb[0].mxu0 %v49
  %v224 = vpop.f32.mrb[0].mxu0
  %v225 = vadd.f32 %v106, %v224
  %v226 = vpop.f32.mrb[0].mxu0
  %227 = vmatprep.mubr.f32.mxu0 %v52
  %228 = vmatmul.mubr.f32.gmra.mrb[0].mxu0 %v51
  %v229 = vpop.f32.mrb[0].mxu0
  %v230 = vadd.f32 %v106, %v229
  %v231 = vpop.f32.mrb[0].mxu0
  %232 = vmatprep.mubr.f32.mxu0 %v54
  %233 = vmatmul.mubr.f32.gmra.mrb[0].mxu0 %v53
  %v234 = vpop.f32.mrb[0].mxu0
  %v235 = vadd.f32 %v106, %v234
  %v236 = vpop.f32.mrb[0].mxu0
  %237 = vmatprep.mubr.f32.mxu0 %v56
  %238 = vmatmul.mubr.f32.gmra.mrb[0].mxu0 %v55
  %v239 = vpop.f32.mrb[0].mxu0
  %v240 = vadd.f32 %v106, %v239
  %v241 = vpop.f32.mrb[0].mxu0
  %242 = vmatprep.mubr.f32.mxu0 %v58
  %243 = vmatmul.mubr.f32.gmra.mrb[0].mxu0 %v57
  %v244 = vpop.f32.mrb[0].mxu0
  %v245 = vadd.f32 %v106, %v244
  %v246 = vpop.f32.mrb[0].mxu0
  %247 = vmatprep.mubr.f32.mxu0 %v60
  %248 = vmatmul.mubr.f32.gmra.mrb[0].mxu0 %v59
  %v249 = vpop.f32.mrb[0].mxu0
  %v250 = vadd.f32 %v106, %v249
  %v251 = vpop.f32.mrb[0].mxu0
  %252 = vmatprep.mubr.f32.mxu0 %v62
  %253 = vmatmul.mubr.f32.gmra.mrb[0].mxu0 %v61
  %v254 = vpop.f32.mrb[0].mxu0
  %v255 = vadd.f32 %v106, %v254
  %v256 = vpop.f32.mrb[0].mxu0
  %257 = vmatprep.mubr.f32.mxu0 %v64
  %258 = vmatmul.mubr.f32.gmra.mrb[0].mxu0 %v63
  %v259 = vpop.f32.mrb[0].mxu0
  %v260 = vadd.f32 %v106, %v259
  %v261 = vpop.f32.mrb[0].mxu0
  %262 = vmatprep.mubr.f32.mxu0 %v66
  %263 = vmatmul.mubr.f32.gmra.mrb[0].mxu0 %v65
  %v264 = vpop.f32.mrb[0].mxu0
  %v265 = vadd.f32 %v106, %v264
  %v266 = vpop.f32.mrb[0].mxu0
  %267 = vmatprep.mubr.f32.mxu0 %v68
  %268 = vmatmul.mubr.f32.gmra.mrb[0].mxu0 %v67
  %v269 = vpop.f32.mrb[0].mxu0
  %v270 = vadd.f32 %v106, %v269
  %v271 = vpop.f32.mrb[0].mxu0
  %272 = vdwg.mxu0
  %v273 = vld [vmem:[%s4] sm:$0xff]
  %v274 = vld [vmem:[%s4 + $0x8] sm:$0xff]
  %v275 = vld [vmem:[%s4 + $0x10] sm:$0xff]
  %v276 = vld [vmem:[%s4 + $0x18] sm:$0xff]
  %v277 = vld [vmem:[%s4 + $0x20] sm:$0xff]
  %v278 = vld [vmem:[%s4 + $0x28] sm:$0xff]
  %v279 = vld [vmem:[%s4 + $0x30] sm:$0xff]
  %v280 = vld [vmem:[%s4 + $0x38] sm:$0xff]
  %v281 = vld [vmem:[%s5] sm:$0xff]
  %v282 = vld [vmem:[%s5 + $0x8] sm:$0xff]
  %v283 = vld [vmem:[%s5 + $0x10] sm:$0xff]
  %v284 = vld [vmem:[%s5 + $0x18] sm:$0xff]
  %286 = vset.pattern.permute.xlu0 0
  %287 = vperm.xlu0 %286, %v281
  %v288 = vpop.permute.xlu0 %287
  %291 = vset.pattern.permute.xlu0 0
  %292 = vperm.xlu0 %291, %v282
  %v293 = vpop.permute.xlu0 %292
  %296 = vset.pattern.permute.xlu0 0
  %297 = vperm.xlu0 %296, %v283
  %v298 = vpop.permute.xlu0 %297
  %301 = vset.pattern.permute.xlu0 0
  %302 = vperm.xlu0 %301, %v284
  %v303 = vpop.permute.xlu0 %302
  %vm305 = vcmask 261120
  %v307 = vsel %vm305, %v274, 0
  %v310 = vsel %vm305, %v276, 0
  %v313 = vsel %vm305, %v278, 0
  %v316 = vsel %vm305, %v280, 0
  %318 = vmatprep.subr.mxu0 0.0
  %319 = vmatpush1.msra.mxu0 %v175
  %320 = vmatprep.subr.mxu0 0.0
  %321 = vmatpush1.msra.mxu0 %v180
  %322 = vmatprep.subr.mxu0 0.0
  %323 = vmatpush1.msra.mxu0 %v185
  %324 = vmatprep.subr.mxu0 0.0
  %325 = vmatpush1.msra.mxu0 %v190
  %326 = vmatprep.subr.mxu0 0.0
  %327 = vmatpush1.msra.mxu0 %v195
  %328 = vmatprep.subr.mxu0 0.0
  %329 = vmatpush1.msra.mxu0 %v200
  %330 = vmatprep.subr.mxu0 0.0
  %331 = vmatpush1.msra.mxu0 %v205
  %332 = vmatprep.subr.mxu0 0.0
  %333 = vmatpush1.msra.mxu0 %v210
  %334 = vmatprep.subr.mxu0 0.0
  %335 = vmatpush1.msra.mxu0 %v215
  %336 = vmatprep.subr.mxu0 0.0
  %337 = vmatpush1.msra.mxu0 %v220
  %338 = vmatprep.subr.mxu0 0.0
  %339 = vmatpush1.msra.mxu0 %v225
  %340 = vmatprep.subr.mxu0 0.0
  %341 = vmatpush1.msra.mxu0 %v230
  %342 = vmatprep.subr.mxu0 0.0
  %343 = vmatpush1.msra.mxu0 %v235
  %344 = vmatprep.subr.mxu0 0.0
  %345 = vmatpush1.msra.mxu0 %v240
  %346 = vmatprep.subr.mxu0 0.0
  %347 = vmatpush1.msra.mxu0 %v245
  %348 = vmatprep.subr.mxu0 0.0
  %349 = vmatpush1.msra.mxu0 %v250
  %350 = vmatprep.subr.mxu0 0.0
  %351 = vmatpush1.msra.mxu0 %v255
  %352 = vmatprep.subr.mxu0 0.0
  %353 = vmatpush1.msra.mxu0 %v260
  %354 = vmatprep.subr.mxu0 0.0
  %355 = vmatpush1.msra.mxu0 %v265
  %356 = vmatprep.subr.mxu0 0.0
  %357 = vmatpush1.msra.mxu0 %v270
  %358 = vmatprep.subr.mxu0 0.0
  %359 = vmatpush1.msra.mxu0 0.0
  %360 = vmatprep.subr.mxu0 0.0
  %361 = vmatpush1.msra.mxu0 0.0
  %362 = vmatprep.subr.mxu0 0.0
  %363 = vmatpush1.msra.mxu0 0.0
  %364 = vmatprep.subr.mxu0 0.0
  %365 = vmatpush1.msra.mxu0 0.0
  %366 = vmatprep.subr.mxu0 0.0
  %367 = vmatpush1.msra.mxu0 0.0
  %368 = vmatprep.subr.mxu0 0.0
  %369 = vmatpush1.msra.mxu0 0.0
  %370 = vmatprep.subr.mxu0 0.0
  %371 = vmatpush1.msra.mxu0 0.0
  %372 = vmatprep.subr.mxu0 0.0
  %373 = vmatpush1.msra.mxu0 0.0
  %374 = vmatprep.subr.mxu0 0.0
  %375 = vmatpush1.msra.mxu0 0.0
  %376 = vmatprep.subr.mxu0 0.0
  %377 = vmatpush1.msra.mxu0 0.0
  %378 = vmatprep.subr.mxu0 0.0
  %379 = vmatpush1.msra.mxu0 0.0
  %380 = vmatprep.subr.mxu0 0.0
  %381 = vmatpush1.msra.mxu0 0.0
  %382 = vmatprep.mubr.f32.mxu0 %v307
  %383 = vmatmul.mubr.f32.gmra.mrb[0].mxu0 %v273
  %v384 = vpop.f32.mrb[0].mxu0
  %v385 = vadd.f32 %v288, %v384
  %v386 = vpop.f32.mrb[0].mxu0
  %387 = vmatprep.mubr.f32.mxu0 %v310
  %388 = vmatmul.mubr.f32.gmra.mrb[0].mxu0 %v275
  %v389 = vpop.f32.mrb[0].mxu0
  %v390 = vadd.f32 %v293, %v389
  %v391 = vpop.f32.mrb[0].mxu0
  %392 = vmatprep.mubr.f32.mxu0 %v313
  %393 = vmatmul.mubr.f32.gmra.mrb[0].mxu0 %v277
  %v394 = vpop.f32.mrb[0].mxu0
  %v395 = vadd.f32 %v298, %v394
  %v396 = vpop.f32.mrb[0].mxu0
  %397 = vmatprep.mubr.f32.mxu0 %v316
  %398 = vmatmul.mubr.f32.gmra.mrb[0].mxu0 %v279
  %v399 = vpop.f32.mrb[0].mxu0
  %v400 = vadd.f32 %v303, %v399
  %v401 = vpop.f32.mrb[0].mxu0
  %402 = vdwg.mxu0
  %v403 = vld [vmem:[%s1] sm:$0xff]
  %v404 = vld [vmem:[%s6] sm:$0x1]
  %v405 = vlaneseq
  %v406 = vshrl.u32 %v405, 7
  %v407 = vsub.s32 0, %v406
  %v408 = vrot.slane %v404, %v407
  %409 = vset.pattern.permute.xlu0 0
  %410 = vperm.xlu0 %409, %v403
  %v411 = vpop.permute.xlu0 %410
  %vm412 = vcmp.ge.s32.totalorder %v408, %v411
  %v413 = vld [vmem:[%s7] sm:$0x1]
  %v414 = vlaneseq
  %v415 = vshrl.u32 %v414, 7
  %v416 = vsub.s32 0, %v415
  %v417 = vrot.slane %v413, %v416
  %vm418 = vcmp.ge.s32.totalorder %v417, %v411
  %vm419 = vmor %vm412, %vm418
  %v420 = vsel %vm419, -1e+09, %v390
  %v421 = vsel %vm419, -1e+09, %v395
  %v422 = vsel %vm419, -1e+09, %v400
  %v423 = vmax.f32 %v385, %v420
  %v424 = vmax.f32 %v421, %v422
  %v425 = vmax.f32 %v423, %v424
  %v426 = vsub.f32 %v385, %v425
  %v427 = vmul.f32 %v426, 1.442695
  %v428 = vpow.pop %v427
  %v429 = vsub.f32 %v420, %v425
  %v430 = vmul.f32 %v429, 1.442695
  %v431 = vpow.pop %v430
  %v432 = vsub.f32 %v421, %v425
  %v433 = vmul.f32 %v432, 1.442695
  %v434 = vpow.pop %v433
  %v435 = vsub.f32 %v422, %v425
  %v436 = vmul.f32 %v435, 1.442695
  %v437 = vpow.pop %v436
  %v438 = vadd.f32 %v428, %v431
  %v439 = vadd.f32 %v438, %v434
  %v440 = vadd.f32 %v439, %v437
  %v441 = vrcp.pop %v440
  %v442 = vmul.f32 %v428, %v441
  %vm443 = vcmask 637952
  %444 = vst.msk [vmem:[%s8] sm:$0xff] %vm443, %v442
  %v445 = vmul.f32 %v431, %v441
  %s446 = scalar_lea.vmem %s8, 8
  %447 = vst.msk [vmem:[%s446] sm:$0xff] %vm443, %v445
  %v448 = vmul.f32 %v434, %v441
  %s449 = scalar_lea.vmem %s8, 16
  %450 = vst.msk [vmem:[%s449] sm:$0xff] %vm443, %v448
  %v451 = vmul.f32 %v437, %v441
  %s452 = scalar_lea.vmem %s8, 24
  %453 = vst.msk [vmem:[%s452] sm:$0xff] %vm443, %v451
  // Predicated region
  $region34: #{classify20_forward.1} parent=0 // pred_check
    _
  $region35: #{classify20_forward.1} parent=0 // pred_check_branch
    %455 = sbr.rel (0) target = $region37
  $region36: #{classify20_forward.1} parent=0 // pred_region
    _
  $region37: #{classify20_forward.1} parent=0 // pred_fallthru
    _
  // Predicated region
  $region38: #{classify20_forward.1} parent=0 // pred_check
    _
  $region39: #{classify20_forward.1} parent=0 // pred_check_branch
    %457 = sbr.rel (0) target = $region41
  $region40: #{classify20_forward.1} parent=0 // pred_region
    _
  $region41: #{classify20_forward.1} parent=0 // pred_fallthru
    _

</llo_original>
